<compile_context>
chip_gen: v5e
topology: v5e:2x2
jax: 0.10.0
libtpu: 0.0.40
codegen_flags: <defaults>
</compile_context>

<pallas_src>
import functools

import jax
import jax.numpy as jnp
from jax.experimental import pallas as pl
from jax.experimental.pallas import tpu as pltpu


def _res_stack_kernel(x_ref, w_ref, b_ref, o_ref, *, n_layer, L, Lp):
    """Fused residual stack: x <- x + silu(conv1d_k3_p1(x)), repeated n_layer times.

    x_ref : (Cp, Wb)              activation slab; Cp = pack*C channels (batch
                                  pairs stacked on sublanes), Wb lanes = whole
                                  batch segments of length Lp folded on lanes.
    w_ref : (n_layer, 3, Cp, Cp)  tap-major block-diagonal conv weights.
    b_ref : (n_layer, Cp, 1)      conv biases (tiled per packed batch item).
    o_ref : (Cp, Wb)
    """
    x = x_ref[...].astype(jnp.float32)
    Cp, Wb = x.shape

    # Per-segment edge masks: implement the conv zero padding and neutralize
    # roll wrap-around between batch segments / lane-padding garbage.
    # Hoisted out of the layer loop (built once, reused every layer).
    pos = jax.lax.broadcasted_iota(jnp.int32, (Cp, Wb), 1) % Lp
    left_edge = pos == 0            # tap x[l-1] at l == 0     -> zero
    right_edge = pos == (L - 1)     # tap x[l+1] at l == L - 1 -> zero

    for layer in range(n_layer):                          # static unroll (small n_layer)
        # Shifted taps on the XLU; shifts are non-negative (Wb-1 == -1 mod Wb).
        x_m1 = jnp.where(left_edge, 0.0, pltpu.roll(x, 1, axis=1))        # x[:, l-1]
        x_p1 = jnp.where(right_edge, 0.0, pltpu.roll(x, Wb - 1, axis=1))  # x[:, l+1]

        conv = (
            jnp.dot(w_ref[layer, 0], x_m1, preferred_element_type=jnp.float32)
            + jnp.dot(w_ref[layer, 1], x, preferred_element_type=jnp.float32)
            + jnp.dot(w_ref[layer, 2], x_p1, preferred_element_type=jnp.float32)
            + b_ref[layer]                                # (Cp, 1) broadcast over lanes
        )
        x = x + conv * jax.nn.sigmoid(conv)               # residual + SiLU

    o_ref[...] = x.astype(o_ref.dtype)


def res_modle_pallas(x, params):
    """Run the whole residual stack in a single fused pallas_call.

    x: (N, C, L) f32; params: list of (w (C, C, 3), b (C,)).
    """
    N, C, L = x.shape
    n_layer = len(params)
    dtype = x.dtype

    # 1) Pack 2 batch items onto the channel/sublane axis (fills the 8 f32
    #    sublanes at C=4).  Pad one dummy batch item if N is odd.
    pack = 2 if N > 1 else 1
    Np = pack * ((N + pack - 1) // pack)
    if Np != N:
        x = jnp.pad(x, ((0, Np - N), (0, 0), (0, 0)))
    N2 = Np // pack
    Cp = pack * C

    # 2) Lane-align each batch segment once (keeps rolls and stores lane-dense).
    Lp = 128 * pl.cdiv(L, 128)
    if Lp != L:
        x = jnp.pad(x, ((0, 0), (0, 0), (0, Lp - L)))

    # 3) Fold all batch segments onto the lane axis: (Np, C, Lp) -> (Cp, N2*Lp).
    #    One (or two) wide grid steps instead of N serial ones.
    x_folded = x.reshape(N2, Cp, Lp).transpose(1, 0, 2).reshape(Cp, N2 * Lp)

    # Weights: tap-major and block-diagonal over the packed batch items so one
    # (Cp, Cp) @ (Cp, lanes) dot handles `pack` batch items at once.
    def _tap_block(wk):                       # wk: (C, C) == W[:, :, k]
        if pack == 1:
            return wk
        z = jnp.zeros_like(wk)
        return jnp.block([[wk, z], [z, wk]])  # (2C, 2C)

    w_all = jnp.stack([
        jnp.stack([_tap_block(w[:, :, k]) for k in range(3)]) for w, _ in params
    ])                                                      # (n_layer, 3, Cp, Cp)
    b_all = jnp.stack([
        jnp.tile(b, (pack,)).reshape(Cp, 1) for _, b in params
    ])                                                      # (n_layer, Cp, 1)

    # Grid: one wide block on 1-TC chips; split the folded lane axis in two
    # (stays a whole number of 128-aligned segments) so both v7x TCs get work.
    G = 2 if N2 % 2 == 0 else 1
    Wb = (N2 // G) * Lp

    kernel = functools.partial(_res_stack_kernel, n_layer=n_layer, L=L, Lp=Lp)
    out_folded = pl.pallas_call(
        kernel,
        out_shape=jax.ShapeDtypeStruct((Cp, N2 * Lp), dtype),
        grid_spec=pltpu.PrefetchScalarGridSpec(
            num_scalar_prefetch=0,
            grid=(G,),
            in_specs=[
                pl.BlockSpec((Cp, Wb), lambda g: (0, g)),
                # Constant index maps: fetched once, VMEM-resident across grid.
                pl.BlockSpec((n_layer, 3, Cp, Cp), lambda g: (0, 0, 0, 0)),
                pl.BlockSpec((n_layer, Cp, 1), lambda g: (0, 0, 0)),
            ],
            out_specs=pl.BlockSpec((Cp, Wb), lambda g: (0, g)),
        ),
        compiler_params=pltpu.CompilerParams(
            dimension_semantics=("parallel",),
        ),
    )(x_folded, w_all, b_all)

    # Undo the folding / padding.
    out = (
        out_folded.reshape(Cp, N2, Lp)
        .transpose(1, 0, 2)[:, :, :L]
        .reshape(Np, C, L)[:N]
    )
    return out


def init_params(key, n_layer, chanal, covsiz=3):
    """Deterministic PyTorch-Conv1d-style init: U(-s, s), s = 1/sqrt(in_ch*k)."""
    params = []
    bound = 1.0 / jnp.sqrt(jnp.float32(chanal * covsiz))
    for _ in range(n_layer):
        kw, kb, key = jax.random.split(key, 3)
        w = jax.random.uniform(kw, (chanal, chanal, covsiz), jnp.float32,
                               minval=-bound, maxval=bound)
        b = jax.random.uniform(kb, (chanal,), jnp.float32,
                               minval=-bound, maxval=bound)
        params.append((w, b))
    return params


if __name__ == "__main__":
    # Small shapes consistent with the module: Conv1d -> input is (N, C, L).
    N, C, L = 2, 4, 16
    n_layer = 2

    key = jax.random.PRNGKey(0)
    kx, kp = jax.random.split(key)
    x = jax.random.normal(kx, (N, C, L), jnp.float32)
    params = init_params(kp, n_layer, C)

    out = jax.block_until_ready(res_modle_pallas(x, params))

    # Reference check in plain JAX (lax conv) to validate semantics.
    ref = x
    for w, b in params:
        conv = jax.lax.conv_general_dilated(
            ref, w, window_strides=(1,), padding=((1, 1),),
            dimension_numbers=("NCH", "OIH", "NCH"))
        conv = conv + b[None, :, None]
        ref = ref + conv * jax.nn.sigmoid(conv)

    assert out.shape == (N, C, L)
    assert jnp.allclose(out, ref, atol=1e-5, rtol=1e-5)
    print("KERNEL_OK")
</pallas_src>

<mosaic_0001>
module attributes {stable_mosaic.version = 11 : i64} {
  func.func @_res_stack_kernel(%arg0: i32, %arg1: memref<8x128xf32, #tpu.memory_space<vmem>>, %arg2: memref<2x3x8x8xf32, #tpu.memory_space<vmem>>, %arg3: memref<2x8x1xf32, #tpu.memory_space<vmem>>, %arg4: memref<8x128xf32, #tpu.memory_space<vmem>>) attributes {dimension_semantics = [#tpu.dimension_semantics<parallel>], iteration_bounds = array<i64: 1>, scalar_prefetch = 0 : i64, scratch_operands = 0 : i64, tpu.core_type = #tpu.core_type<tc>, window_params = [{transform_indices = @transform_0, window_bounds = array<i64: 8, 128>}, {pipeline_mode = #tpu.pipeline_mode<synchronous>, transform_indices = @transform_1, window_bounds = array<i64: 2, 3, 8, 8>}, {pipeline_mode = #tpu.pipeline_mode<synchronous>, transform_indices = @transform_2, window_bounds = array<i64: 2, 8, 1>}, {transform_indices = @transform_3, window_bounds = array<i64: 8, 128>}]} {
    %c0 = arith.constant 0 : index
    %c0_0 = arith.constant 0 : index
    %0 = vector.load %arg1[%c0, %c0_0] : memref<8x128xf32, #tpu.memory_space<vmem>>, vector<8x128xf32>
    %1 = tpu.iota {dimensions = array<i32: 1>} : vector<8x128xi32>
    %c128_i32 = arith.constant 128 : i32
    %c0_i32 = arith.constant 0 : i32
    %2 = arith.cmpi eq, %c128_i32, %c0_i32 : i32
    %c1_i32 = arith.constant 1 : i32
    %3 = arith.select %2, %c1_i32, %c128_i32 : i32
    %4 = vector.broadcast %3 : i32 to vector<8x128xi32>
    %5 = arith.remsi %1, %4 : vector<8x128xi32>
    %c0_i32_1 = arith.constant 0 : i32
    %6 = vector.broadcast %c0_i32_1 : i32 to vector<8x128xi32>
    %7 = arith.cmpi ne, %5, %6 : vector<8x128xi32>
    %c0_i32_2 = arith.constant 0 : i32
    %8 = vector.broadcast %c0_i32_2 : i32 to vector<8x128xi32>
    %9 = arith.cmpi slt, %5, %8 : vector<8x128xi32>
    %c0_i32_3 = arith.constant 0 : i32
    %10 = arith.cmpi slt, %3, %c0_i32_3 : i32
    %11 = vector.broadcast %10 : i1 to vector<8x128xi1>
    %12 = vector.broadcast %11 : vector<8x128xi1> to vector<8x128xi1>
    %13 = arith.xori %9, %12 : vector<8x128xi1>
    %14 = arith.andi %13, %7 : vector<8x128xi1>
    %15 = vector.broadcast %3 : i32 to vector<8x128xi32>
    %16 = arith.addi %5, %15 : vector<8x128xi32>
    %17 = arith.select %14, %16, %5 : vector<8x128xi1>, vector<8x128xi32>
    %c0_i32_4 = arith.constant 0 : i32
    %18 = vector.broadcast %c0_i32_4 : i32 to vector<8x128xi32>
    %19 = arith.cmpi eq, %17, %18 : vector<8x128xi32>
    %c15_i32 = arith.constant 15 : i32
    %20 = vector.broadcast %c15_i32 : i32 to vector<8x128xi32>
    %21 = arith.cmpi eq, %17, %20 : vector<8x128xi32>
    %c1_i32_5 = arith.constant 1 : i32
    %22 = tpu.dynamic_rotate %0 by %c1_i32_5 dim 1 : vector<8x128xf32>, i32 -> vector<8x128xf32>
    %cst = arith.constant 0.000000e+00 : f32
    %23 = vector.broadcast %cst : f32 to vector<8x128xf32>
    %24 = arith.select %19, %23, %22 : vector<8x128xi1>, vector<8x128xf32>
    %c127_i32 = arith.constant 127 : i32
    %25 = tpu.dynamic_rotate %0 by %c127_i32 dim 1 : vector<8x128xf32>, i32 -> vector<8x128xf32>
    %cst_6 = arith.constant 0.000000e+00 : f32
    %26 = vector.broadcast %cst_6 : f32 to vector<8x128xf32>
    %27 = arith.select %21, %26, %25 : vector<8x128xi1>, vector<8x128xf32>
    %c0_7 = arith.constant 0 : index
    %c0_8 = arith.constant 0 : index
    %c0_9 = arith.constant 0 : index
    %c0_10 = arith.constant 0 : index
    %28 = vector.load %arg2[%c0_7, %c0_8, %c0_9, %c0_10] : memref<2x3x8x8xf32, #tpu.memory_space<vmem>>, vector<1x1x8x8xf32>
    %29 = vector.shape_cast %28 : vector<1x1x8x8xf32> to vector<8x8xf32>
    %cst_11 = arith.constant dense<0.000000e+00> : vector<8x128xf32>
    %30 = tpu.matmul %29, %24, %cst_11 {dimension_numbers = #tpu.dot_dimension_numbers<[1], [0], [0], [1], [0, 0, 1, 1], [], []>} : vector<8x8xf32>, vector<8x128xf32>, vector<8x128xf32> -> vector<8x128xf32>
    %c0_12 = arith.constant 0 : index
    %c1 = arith.constant 1 : index
    %c0_13 = arith.constant 0 : index
    %c0_14 = arith.constant 0 : index
    %31 = vector.load %arg2[%c0_12, %c1, %c0_13, %c0_14] : memref<2x3x8x8xf32, #tpu.memory_space<vmem>>, vector<1x1x8x8xf32>
    %32 = vector.shape_cast %31 : vector<1x1x8x8xf32> to vector<8x8xf32>
    %cst_15 = arith.constant dense<0.000000e+00> : vector<8x128xf32>
    %33 = tpu.matmul %32, %0, %cst_15 {dimension_numbers = #tpu.dot_dimension_numbers<[1], [0], [0], [1], [0, 0, 1, 1], [], []>} : vector<8x8xf32>, vector<8x128xf32>, vector<8x128xf32> -> vector<8x128xf32>
    %34 = arith.addf %30, %33 : vector<8x128xf32>
    %c0_16 = arith.constant 0 : index
    %c2 = arith.constant 2 : index
    %c0_17 = arith.constant 0 : index
    %c0_18 = arith.constant 0 : index
    %35 = vector.load %arg2[%c0_16, %c2, %c0_17, %c0_18] : memref<2x3x8x8xf32, #tpu.memory_space<vmem>>, vector<1x1x8x8xf32>
    %36 = vector.shape_cast %35 : vector<1x1x8x8xf32> to vector<8x8xf32>
    %cst_19 = arith.constant dense<0.000000e+00> : vector<8x128xf32>
    %37 = tpu.matmul %36, %27, %cst_19 {dimension_numbers = #tpu.dot_dimension_numbers<[1], [0], [0], [1], [0, 0, 1, 1], [], []>} : vector<8x8xf32>, vector<8x128xf32>, vector<8x128xf32> -> vector<8x128xf32>
    %38 = arith.addf %34, %37 : vector<8x128xf32>
    %c0_20 = arith.constant 0 : index
    %c0_21 = arith.constant 0 : index
    %c0_22 = arith.constant 0 : index
    %39 = vector.load %arg3[%c0_20, %c0_21, %c0_22] : memref<2x8x1xf32, #tpu.memory_space<vmem>>, vector<1x8x1xf32>
    %40 = vector.shape_cast %39 : vector<1x8x1xf32> to vector<8x1xf32>
    %41 = vector.broadcast %40 : vector<8x1xf32> to vector<8x128xf32>
    %42 = arith.addf %38, %41 : vector<8x128xf32>
    %43 = arith.negf %42 : vector<8x128xf32>
    %44 = math.exp %43 : vector<8x128xf32>
    %cst_23 = arith.constant 1.000000e+00 : f32
    %45 = vector.broadcast %cst_23 : f32 to vector<8x128xf32>
    %46 = arith.addf %45, %44 : vector<8x128xf32>
    %47 = arith.divf %45, %46 : vector<8x128xf32>
    %48 = arith.mulf %42, %47 : vector<8x128xf32>
    %49 = arith.addf %0, %48 : vector<8x128xf32>
    %c1_i32_24 = arith.constant 1 : i32
    %50 = tpu.dynamic_rotate %49 by %c1_i32_24 dim 1 : vector<8x128xf32>, i32 -> vector<8x128xf32>
    %cst_25 = arith.constant 0.000000e+00 : f32
    %51 = vector.broadcast %cst_25 : f32 to vector<8x128xf32>
    %52 = arith.select %19, %51, %50 : vector<8x128xi1>, vector<8x128xf32>
    %c127_i32_26 = arith.constant 127 : i32
    %53 = tpu.dynamic_rotate %49 by %c127_i32_26 dim 1 : vector<8x128xf32>, i32 -> vector<8x128xf32>
    %cst_27 = arith.constant 0.000000e+00 : f32
    %54 = vector.broadcast %cst_27 : f32 to vector<8x128xf32>
    %55 = arith.select %21, %54, %53 : vector<8x128xi1>, vector<8x128xf32>
    %c1_28 = arith.constant 1 : index
    %c0_29 = arith.constant 0 : index
    %c0_30 = arith.constant 0 : index
    %c0_31 = arith.constant 0 : index
    %56 = vector.load %arg2[%c1_28, %c0_29, %c0_30, %c0_31] : memref<2x3x8x8xf32, #tpu.memory_space<vmem>>, vector<1x1x8x8xf32>
    %57 = vector.shape_cast %56 : vector<1x1x8x8xf32> to vector<8x8xf32>
    %cst_32 = arith.constant dense<0.000000e+00> : vector<8x128xf32>
    %58 = tpu.matmul %57, %52, %cst_32 {dimension_numbers = #tpu.dot_dimension_numbers<[1], [0], [0], [1], [0, 0, 1, 1], [], []>} : vector<8x8xf32>, vector<8x128xf32>, vector<8x128xf32> -> vector<8x128xf32>
    %c1_33 = arith.constant 1 : index
    %c1_34 = arith.constant 1 : index
    %c0_35 = arith.constant 0 : index
    %c0_36 = arith.constant 0 : index
    %59 = vector.load %arg2[%c1_33, %c1_34, %c0_35, %c0_36] : memref<2x3x8x8xf32, #tpu.memory_space<vmem>>, vector<1x1x8x8xf32>
    %60 = vector.shape_cast %59 : vector<1x1x8x8xf32> to vector<8x8xf32>
    %cst_37 = arith.constant dense<0.000000e+00> : vector<8x128xf32>
    %61 = tpu.matmul %60, %49, %cst_37 {dimension_numbers = #tpu.dot_dimension_numbers<[1], [0], [0], [1], [0, 0, 1, 1], [], []>} : vector<8x8xf32>, vector<8x128xf32>, vector<8x128xf32> -> vector<8x128xf32>
    %62 = arith.addf %58, %61 : vector<8x128xf32>
    %c1_38 = arith.constant 1 : index
    %c2_39 = arith.constant 2 : index
    %c0_40 = arith.constant 0 : index
    %c0_41 = arith.constant 0 : index
    %63 = vector.load %arg2[%c1_38, %c2_39, %c0_40, %c0_41] : memref<2x3x8x8xf32, #tpu.memory_space<vmem>>, vector<1x1x8x8xf32>
    %64 = vector.shape_cast %63 : vector<1x1x8x8xf32> to vector<8x8xf32>
    %cst_42 = arith.constant dense<0.000000e+00> : vector<8x128xf32>
    %65 = tpu.matmul %64, %55, %cst_42 {dimension_numbers = #tpu.dot_dimension_numbers<[1], [0], [0], [1], [0, 0, 1, 1], [], []>} : vector<8x8xf32>, vector<8x128xf32>, vector<8x128xf32> -> vector<8x128xf32>
    %66 = arith.addf %62, %65 : vector<8x128xf32>
    %c1_43 = arith.constant 1 : index
    %c0_44 = arith.constant 0 : index
    %c0_45 = arith.constant 0 : index
    %67 = vector.load %arg3[%c1_43, %c0_44, %c0_45] : memref<2x8x1xf32, #tpu.memory_space<vmem>>, vector<1x8x1xf32>
    %68 = vector.shape_cast %67 : vector<1x8x1xf32> to vector<8x1xf32>
    %69 = vector.broadcast %68 : vector<8x1xf32> to vector<8x128xf32>
    %70 = arith.addf %66, %69 : vector<8x128xf32>
    %71 = arith.negf %70 : vector<8x128xf32>
    %72 = math.exp %71 : vector<8x128xf32>
    %cst_46 = arith.constant 1.000000e+00 : f32
    %73 = vector.broadcast %cst_46 : f32 to vector<8x128xf32>
    %74 = arith.addf %73, %72 : vector<8x128xf32>
    %75 = arith.divf %73, %74 : vector<8x128xf32>
    %76 = arith.mulf %70, %75 : vector<8x128xf32>
    %77 = arith.addf %49, %76 : vector<8x128xf32>
    %c0_47 = arith.constant 0 : index
    %c0_48 = arith.constant 0 : index
    %78 = vector.load %arg4[%c0_47, %c0_48] : memref<8x128xf32, #tpu.memory_space<vmem>>, vector<8x128xf32>
    tpu.vector_store %arg4[%c0_47, %c0_48], %77 {strides = array<i32>} : memref<8x128xf32, #tpu.memory_space<vmem>>, vector<8x128xf32>,
    return
  }
  func.func @transform_0(%arg0: i32) -> (i32, i32) {
    %c0_i32 = arith.constant 0 : i32
    %c0_i32_0 = arith.constant 0 : i32
    return %c0_i32, %arg0 : i32, i32
  }
  func.func @transform_1(%arg0: i32) -> (i32, i32, i32, i32) {
    %c0_i32 = arith.constant 0 : i32
    %c0_i32_0 = arith.constant 0 : i32
    %c0_i32_1 = arith.constant 0 : i32
    %c0_i32_2 = arith.constant 0 : i32
    %c0_i32_3 = arith.constant 0 : i32
    return %c0_i32, %c0_i32_0, %c0_i32_1, %c0_i32_2 : i32, i32, i32, i32
  }
  func.func @transform_2(%arg0: i32) -> (i32, i32, i32) {
    %c0_i32 = arith.constant 0 : i32
    %c0_i32_0 = arith.constant 0 : i32
    %c0_i32_1 = arith.constant 0 : i32
    %c0_i32_2 = arith.constant 0 : i32
    return %c0_i32, %c0_i32_0, %c0_i32_1 : i32, i32, i32
  }
  func.func @transform_3(%arg0: i32) -> (i32, i32) {
    %c0_i32 = arith.constant 0 : i32
    %c0_i32_0 = arith.constant 0 : i32
    return %c0_i32, %arg0 : i32, i32
  }
}

</mosaic_0001>

<llo_original>
// kernel: tpu_custom_call.1
$region0: #{tpu_custom_call.1}
  #allocation0 [shape = 'u32[]', space=smem, size = 0x4, offset = 0x4, fixed_abs, tag = 'smem constant byte address 0x4 - core index']
  #allocation1 [shape = 'u32[72,128]{1,0:T(1,128)}', space=vmem, size = 0x9000, scoped, tag = 'internal scratch']
  %s0 = inlined_call_operand.vmem [shape: f32[8,128], index: 0, kind: input, shape index: {}]
  %s1 = inlined_call_operand.hbm [shape: f32[2,3,8,8], index: 1, kind: input, shape index: {}]
  %s2 = inlined_call_operand.vmem [shape: f32[2,8,1], index: 2, kind: input, shape index: {}]
  %s3 = inlined_call_operand.hbm [shape: f32[8,128], index: 3, kind: output, shape index: {}]
  %s4 = sld [smem:[#allocation0]]
  $region26: #{tpu_custom_call.1} parent=0
    _
  %s6 = ssub.s32 1, %s4
  %s7 = scalar_select 0, %s6, %s4
  $region1: #{tpu_custom_call.1} parent=0
    #allocation2 [shape = 'u8[24576]{0}', space=vmem, size = 0x6000, scoped, tag = 'input window, operand 1, single buffered']
    #allocation3 [shape = 's32[1]{0}', space=sflag, size = 0x4, scoped, tag = 'scoped memory for tpu_custom_call.1']
    #allocation4 [shape = 's32[1]{0}', space=sflag, size = 0x4, scoped, tag = 'scoped memory for tpu_custom_call.1']
    #allocation5 [shape = 'u8[4096]{0}', space=vmem, size = 0x1000, scoped, tag = 'output window, operand 0, single buffered']
    %8 = vsyncpa [#allocation3], 0
    %9 = vsyncpa [#allocation4], 0
    // Predicated region
    $region2: #{tpu_custom_call.1} parent=1 // pred_check
      _
    $region3: #{tpu_custom_call.1} parent=1 // pred_check_branch
      %11 = sbr.rel (0) target = $region5
    $region4: #{tpu_custom_call.1} parent=1 // pred_region
      _
    $region5: #{tpu_custom_call.1} parent=1 // pred_fallthru
      _
    // Predicated region
    $region6: #{tpu_custom_call.1} parent=1 // pred_check
      _
    $region7: #{tpu_custom_call.1} parent=1 // pred_check_branch
      %13 = sbr.rel (0) target = $region9
    $region8: #{tpu_custom_call.1} parent=1 // pred_region
      %15 = vsyncadd [#allocation3], 0
      %s16 = sshll.u32 %s1, 4
      %s17 = int_to_ptr.hbm [resolvable:$true] %s16
      %s18 = sshll.u32 [#allocation2], 4
      %s19 = int_to_ptr.vmem [resolvable:$true] %s18
      %24 = dma.hbm_to_vmem [thread:$0]  %s17, 768, %s19, [#allocation3], 128, 128, 8
    $region9: #{tpu_custom_call.1} parent=1 // pred_fallthru
      _
    // Predicated region
    $region10: #{tpu_custom_call.1} parent=1 // pred_check
      _
    $region11: #{tpu_custom_call.1} parent=1 // pred_check_branch
      %26 = sbr.rel (0) target = $region13
    $region12: #{tpu_custom_call.1} parent=1 // pred_region
      _
    $region13: #{tpu_custom_call.1} parent=1 // pred_fallthru
      _
    // Predicated region
    $region14: #{tpu_custom_call.1} parent=1 // pred_check
      _
    $region15: #{tpu_custom_call.1} parent=1 // pred_check_branch
      %28 = sbr.rel (0) target = $region17
    $region16: #{tpu_custom_call.1} parent=1 // pred_region
      %30 = dma.done [#allocation3], 768
    $region17: #{tpu_custom_call.1} parent=1 // pred_fallthru
      _
    %v31 = vld [vmem:[%s0] sm:$0xff]
    %v32 = vlaneseq
    %v33 = vand.u32 %v32, 127
    %vm34 = vcmp.lt.s32.totalorder %v33, 0
    %v35 = vsub.s32 0, %v33
    %v36 = vsel %vm34, %v35, %v33
    %v37 = vshrl.u32 %v36, 7
    %v38 = vand.u32 %v36, 127
    %v39 = vsub.s32 0, %v38
    %v40 = vsel %vm34, %v39, %v38
    %vm41 = vcmp.ne.s32.totalorder %v40, 0
    %vm42 = vcmp.lt.s32.totalorder %v40, 0
    %vm43 = vmand %vm42, %vm41
    %v44 = vadd.s32 %v40, 128
    %v45 = vsel %vm43, %v44, %v40
    %vm46 = vcmp.eq.s32.totalorder %v45, 0
    %vm47 = vcmp.eq.s32.totalorder %v45, 15
    %48 = vrot.lane.b32.xlu0 %v31, 1
    %v49 = vpop.permute.xlu0 %48
    %v50 = vsel %vm46, 0.0, %v49
    %51 = vrot.lane.b32.xlu0 %v31, 127
    %v52 = vpop.permute.xlu0 %51
    %v53 = vsel %vm47, 0.0, %v52
    %v54 = vld [vmem:[#allocation2] sm:$0xff]
    %s55 = scalar_lea.vmem [#allocation2], 8
    %v56 = vld [vmem:[%s55] sm:$0xff]
    %vm57 = vcmask 64512
    %v59 = vsel %vm57, %v56, 0
    %61 = vmatpush.msra.mxu0 0.0
    %62 = vmatpush.msra.mxu0 0.0
    %63 = vmatpush.msra.mxu0 0.0
    %64 = vmatpush.msra.mxu0 0.0
    %65 = vmatpush.msra.mxu0 0.0
    %66 = vmatpush.msra.mxu0 0.0
    %67 = vmatpush.msra.mxu0 0.0
    %68 = vmatpush.msra.mxu0 0.0
    %69 = vmatpush.msra.mxu0 0.0
    %70 = vmatpush.msra.mxu0 0.0
    %71 = vmatpush.msra.mxu0 0.0
    %72 = vmatpush.msra.mxu0 0.0
    %73 = vmatpush.msra.mxu0 0.0
    %74 = vmatpush.msra.mxu0 0.0
    %75 = vmatpush.msra.mxu0 0.0
    %76 = vmatpush.msra.mxu0 %v31
    %77 = vmatmul.f32.gmra.mxu0 %v59
    %v78 = vpop.f32.mrf.mxu0
    %v79 = vadd.f32 0.0, %v78
    %80 = vdwg.mxu0
    %v82 = vsel %vm57, %v54, 0
    %84 = vmatpush.msra.mxu0 0.0
    %85 = vmatpush.msra.mxu0 0.0
    %86 = vmatpush.msra.mxu0 0.0
    %87 = vmatpush.msra.mxu0 0.0
    %88 = vmatpush.msra.mxu0 0.0
    %89 = vmatpush.msra.mxu0 0.0
    %90 = vmatpush.msra.mxu0 0.0
    %91 = vmatpush.msra.mxu0 0.0
    %92 = vmatpush.msra.mxu0 0.0
    %93 = vmatpush.msra.mxu0 0.0
    %94 = vmatpush.msra.mxu0 0.0
    %95 = vmatpush.msra.mxu0 0.0
    %96 = vmatpush.msra.mxu0 0.0
    %97 = vmatpush.msra.mxu0 0.0
    %98 = vmatpush.msra.mxu0 0.0
    %99 = vmatpush.msra.mxu0 %v50
    %100 = vmatmul.f32.gmra.mxu0 %v82
    %v101 = vpop.f32.mrf.mxu0
    %v102 = vadd.f32 %v79, %v101
    %103 = vdwg.mxu0
    %s104 = scalar_lea.vmem [#allocation2], 16
    %v105 = vld [vmem:[%s104] sm:$0xff]
    %v107 = vsel %vm57, %v105, 0
    %109 = vmatpush.msra.mxu0 0.0
    %110 = vmatpush.msra.mxu0 0.0
    %111 = vmatpush.msra.mxu0 0.0
    %112 = vmatpush.msra.mxu0 0.0
    %113 = vmatpush.msra.mxu0 0.0
    %114 = vmatpush.msra.mxu0 0.0
    %115 = vmatpush.msra.mxu0 0.0
    %116 = vmatpush.msra.mxu0 0.0
    %117 = vmatpush.msra.mxu0 0.0
    %118 = vmatpush.msra.mxu0 0.0
    %119 = vmatpush.msra.mxu0 0.0
    %120 = vmatpush.msra.mxu0 0.0
    %121 = vmatpush.msra.mxu0 0.0
    %122 = vmatpush.msra.mxu0 0.0
    %123 = vmatpush.msra.mxu0 0.0
    %124 = vmatpush.msra.mxu0 %v53
    %125 = vmatmul.f32.gmra.mxu0 %v107
    %v126 = vpop.f32.mrf.mxu0
    %v127 = vadd.f32 0.0, %v126
    %128 = vdwg.mxu0
    %v129 = vadd.f32 %v102, %v127
    %v130 = vld [vmem:[%s2] sm:$0xff]
    %132 = vset.pattern.permute.xlu0 0
    %133 = vperm.xlu0 %132, %v130
    %v134 = vpop.permute.xlu0 %133
    %v136 = vadd.f32 %v129, %v134
    %v137 = vxor.u32 %v136, 2147483648
    %v138 = vmul.f32 %v137, 1.442695
    %v139 = vpow.pop %v138
    %v140 = vadd.f32 %v139, 1.0
    %v141 = vrcp.pop %v140
    %v142 = vmul.f32 %v140, %v141
    %v143 = vsub.f32 1.0, %v142
    %v144 = vmul.f32 %v141, %v143
    %v145 = vadd.f32 %v141, %v144
    %vm146 = vweird.f32 %v140
    %vm147 = vweird.f32 %v141
    %vm148 = vmor %vm146, %vm147
    %v149 = vsel %vm148, %v141, %v145
    %v150 = vand.u32 2147483647, %v140
    %vm151 = vcmp.eq.f32.partialorder %v150, 8.507059e+37
    %v152 = vand.u32 %v140, 2147483648
    %v153 = vor.u32 1.1754944e-38, %v152
    %v154 = vsel %vm151, %v153, %v149
    %v155 = vmul.f32 1.0, %v154
    %v156 = vmul.f32 %v136, %v155
    %v157 = vadd.f32 %v31, %v156
    %158 = vrot.lane.b32.xlu0 %v157, 1
    %v159 = vpop.permute.xlu0 %158
    %v160 = vsel %vm46, 0.0, %v159
    %161 = vrot.lane.b32.xlu0 %v157, 127
    %v162 = vpop.permute.xlu0 %161
    %v163 = vsel %vm47, 0.0, %v162
    %s164 = scalar_lea.vmem [#allocation2], 24
    %v165 = vld [vmem:[%s164] sm:$0xff]
    %s166 = scalar_lea.vmem [#allocation2], 32
    %v167 = vld [vmem:[%s166] sm:$0xff]
    %v169 = vsel %vm57, %v167, 0
    %171 = vmatpush.msra.mxu0 0.0
    %172 = vmatpush.msra.mxu0 0.0
    %173 = vmatpush.msra.mxu0 0.0
    %174 = vmatpush.msra.mxu0 0.0
    %175 = vmatpush.msra.mxu0 0.0
    %176 = vmatpush.msra.mxu0 0.0
    %177 = vmatpush.msra.mxu0 0.0
    %178 = vmatpush.msra.mxu0 0.0
    %179 = vmatpush.msra.mxu0 0.0
    %180 = vmatpush.msra.mxu0 0.0
    %181 = vmatpush.msra.mxu0 0.0
    %182 = vmatpush.msra.mxu0 0.0
    %183 = vmatpush.msra.mxu0 0.0
    %184 = vmatpush.msra.mxu0 0.0
    %185 = vmatpush.msra.mxu0 0.0
    %186 = vmatpush.msra.mxu0 %v157
    %187 = vmatmul.f32.gmra.mxu0 %v169
    %v188 = vpop.f32.mrf.mxu0
    %v189 = vadd.f32 0.0, %v188
    %190 = vdwg.mxu0
    %v192 = vsel %vm57, %v165, 0
    %194 = vmatpush.msra.mxu0 0.0
    %195 = vmatpush.msra.mxu0 0.0
    %196 = vmatpush.msra.mxu0 0.0
    %197 = vmatpush.msra.mxu0 0.0
    %198 = vmatpush.msra.mxu0 0.0
    %199 = vmatpush.msra.mxu0 0.0
    %200 = vmatpush.msra.mxu0 0.0
    %201 = vmatpush.msra.mxu0 0.0
    %202 = vmatpush.msra.mxu0 0.0
    %203 = vmatpush.msra.mxu0 0.0
    %204 = vmatpush.msra.mxu0 0.0
    %205 = vmatpush.msra.mxu0 0.0
    %206 = vmatpush.msra.mxu0 0.0
    %207 = vmatpush.msra.mxu0 0.0
    %208 = vmatpush.msra.mxu0 0.0
    %209 = vmatpush.msra.mxu0 %v160
    %210 = vmatmul.f32.gmra.mxu0 %v192
    %v211 = vpop.f32.mrf.mxu0
    %v212 = vadd.f32 %v189, %v211
    %213 = vdwg.mxu0
    %s214 = scalar_lea.vmem [#allocation2], 40
    %v215 = vld [vmem:[%s214] sm:$0xff]
    %v217 = vsel %vm57, %v215, 0
    %219 = vmatpush.msra.mxu0 0.0
    %220 = vmatpush.msra.mxu0 0.0
    %221 = vmatpush.msra.mxu0 0.0
    %222 = vmatpush.msra.mxu0 0.0
    %223 = vmatpush.msra.mxu0 0.0
    %224 = vmatpush.msra.mxu0 0.0
    %225 = vmatpush.msra.mxu0 0.0
    %226 = vmatpush.msra.mxu0 0.0
    %227 = vmatpush.msra.mxu0 0.0
    %228 = vmatpush.msra.mxu0 0.0
    %229 = vmatpush.msra.mxu0 0.0
    %230 = vmatpush.msra.mxu0 0.0
    %231 = vmatpush.msra.mxu0 0.0
    %232 = vmatpush.msra.mxu0 0.0
    %233 = vmatpush.msra.mxu0 0.0
    %234 = vmatpush.msra.mxu0 %v163
    %235 = vmatmul.f32.gmra.mxu0 %v217
    %v236 = vpop.f32.mrf.mxu0
    %v237 = vadd.f32 0.0, %v236
    %238 = vdwg.mxu0
    %v239 = vadd.f32 %v212, %v237
    %s240 = scalar_lea.vmem %s2, 8
    %v241 = vld [vmem:[%s240] sm:$0xff]
    %243 = vset.pattern.permute.xlu0 0
    %244 = vperm.xlu0 %243, %v241
    %v245 = vpop.permute.xlu0 %244
    %v247 = vadd.f32 %v239, %v245
    %v248 = vxor.u32 %v247, 2147483648
    %v249 = vmul.f32 %v248, 1.442695
    %v250 = vpow.pop %v249
    %v251 = vadd.f32 %v250, 1.0
    %v252 = vrcp.pop %v251
    %v253 = vmul.f32 %v251, %v252
    %v254 = vsub.f32 1.0, %v253
    %v255 = vmul.f32 %v252, %v254
    %v256 = vadd.f32 %v252, %v255
    %vm257 = vweird.f32 %v251
    %vm258 = vweird.f32 %v252
    %vm259 = vmor %vm257, %vm258
    %v260 = vsel %vm259, %v252, %v256
    %v261 = vand.u32 2147483647, %v251
    %vm262 = vcmp.eq.f32.partialorder %v261, 8.507059e+37
    %v263 = vand.u32 %v251, 2147483648
    %v264 = vor.u32 1.1754944e-38, %v263
    %v265 = vsel %vm262, %v264, %v260
    %v266 = vmul.f32 1.0, %v265
    %v267 = vmul.f32 %v247, %v266
    %v268 = vadd.f32 %v157, %v267
    %269 = vst [vmem:[#allocation5] sm:$0xff] %v268
    // Predicated region
    $region18: #{tpu_custom_call.1} parent=1 // pred_check
      _
    $region19: #{tpu_custom_call.1} parent=1 // pred_check_branch
      %271 = sbr.rel (0) target = $region21
    $region20: #{tpu_custom_call.1} parent=1 // pred_region
      %273 = vsyncadd [#allocation4], 0
      %s275 = sshll.u32 [#allocation5], 4
      %s276 = int_to_ptr.vmem [resolvable:$true] %s275
      %s277 = sshll.u32 %s3, 4
      %s278 = int_to_ptr.hbm [resolvable:$true] %s277
      %280 = dma.vmem_to_hbm [thread:$0]  %s276, 128, %s278, [#allocation4]
    $region21: #{tpu_custom_call.1} parent=1 // pred_fallthru
      _
    // Predicated region
    $region22: #{tpu_custom_call.1} parent=1 // pred_check
      _
    $region23: #{tpu_custom_call.1} parent=1 // pred_check_branch
      %282 = sbr.rel (0) target = $region25
    $region24: #{tpu_custom_call.1} parent=1 // pred_region
      %284 = dma.done [#allocation4], 128
    $region25: #{tpu_custom_call.1} parent=1 // pred_fallthru
      _
    %285 = vsyncpa [#allocation3], 1
    %286 = vsyncpa [#allocation4], 1

</llo_original>
